<compile_context>
chip_gen: v7x
topology: tpu7x:2x2x1
jax: 0.10.0
libtpu: 0.0.40
codegen_flags: <defaults>
</compile_context>

<pallas_src>
import functools

import jax
import jax.numpy as jnp
from jax.experimental import pallas as pl
from jax.experimental.pallas import tpu as pltpu

_EPS = 1e-7          # eps[float32] in the reference manifold code
_MAX_NORM = 1000.0   # manifold.max_norm used by normalize()


def _lorentz_act_kernel(x_ref, o_ref, *, c_in, c_out):
    # Block layout: (D, TILE_N) -- features on sublanes, points on lanes.
    x = x_ref[...].astype(jnp.float32)
    d, tn = x.shape

    row = jax.lax.broadcasted_iota(jnp.int32, (d, tn), 0)
    is_time = row == 0

    x0 = x[0:1, :]                              # (1, TN) time coordinate, direct slice
    x_tail = jnp.where(is_time, 0.0, x)         # (D, TN) spatial part (time row zeroed)

    # ---------------- log_map_zero(x, c_in) ----------------
    sqrt_cin = c_in ** 0.5
    inv_sqrt_cin = 1.0 / sqrt_cin
    # induced_distance(o, x) = sqrt(c) * arcosh(x0 / sqrt(c) + eps)
    z = x0 * inv_sqrt_cin + _EPS
    zc = jnp.maximum(z, 1.0 + _EPS)             # Arcosh clamp
    arcosh = jnp.log(zc + jnp.sqrt(zc * zc - 1.0))
    dist = sqrt_cin * arcosh                    # (1, TN)

    tail_sq = jnp.sum(x_tail * x_tail, axis=0, keepdims=True)      # (1, TN)
    inv_tmp_norm = jax.lax.rsqrt(tail_sq + _EPS)                   # 1/||(0,x_tail)||_L
    tan_scale = dist * inv_tmp_norm                                # (1, TN)

    # -------- act(.) then normalize_tangent_zero(., c_in) --------
    # normalize_tangent_zero forces the time component to 0 (origin has zero tail),
    # so only the activated spatial part survives.
    u_tail = jnp.maximum(tan_scale * x_tail, 0.0)                  # act = ReLU, (D, TN)

    # ---------------- exp_map_zero(u, c_out) ----------------
    sqrt_cout = c_out ** 0.5
    inv_sqrt_cout = 1.0 / sqrt_cout
    u_sq = jnp.sum(u_tail * u_tail, axis=0, keepdims=True)         # <u,u>_L (time comp 0)
    m = jnp.maximum(u_sq + _EPS, 1e-6)
    inv_u_lnorm = jax.lax.rsqrt(m)                                 # 1/||u||
    u_lnorm = m * inv_u_lnorm                                      # ||u|| without 2nd sqrt
    theta = jnp.minimum(u_lnorm, 50.0) * inv_sqrt_cout
    et = jnp.exp(theta)
    sinh_t = 0.5 * (et - pl.reciprocal(et))                        # exact reciprocal (EUP)
    # res_tail = k * u_tail ; the time component of res is discarded because
    # normalize() recomputes it from the spatial part.
    k = sqrt_cout * sinh_t * inv_u_lnorm                           # (1, TN), k >= 0

    # -------- normalize(res, c_out): renorm tail, recompute time --------
    tail_norm = k * u_lnorm                                        # = ||res_tail||
    scale = jnp.where(tail_norm > _MAX_NORM, _MAX_NORM / (tail_norm + 1e-7), 1.0)
    ks = k * scale                                                 # (1, TN)
    out_tail = ks * u_tail                                         # (D, TN)
    out_time = jnp.sqrt(c_out + (ks * ks) * u_sq)                  # sqrt(c + sum(out_tail^2))

    o_ref[...] = jnp.where(is_time, out_time, out_tail).astype(o_ref.dtype)


def _round_up(v, m):
    return (v + m - 1) // m * m


def _pick_tile_n(n, d, max_tile_n=1024, vmem_budget_bytes=8 << 20):
    # Lane axis must be a multiple of 128 (full-width, unmasked vector stores).
    tile = min(_round_up(max_tile_n, 128), _round_up(n, 128))
    # in + out blocks, double-buffered, f32 -> 16 * d * tile bytes.  Keep this well
    # under the default scoped-VMEM limits (16/32/32 MiB on v5e/v6e/v7x) so large-D
    # variants still fit v7x's 64 MiB physical VMEM with headroom.
    while tile > 128 and 16 * d * tile > vmem_budget_bytes:
        tile -= 128
    return tile


def lorentz_act(x, c_in=1.0, c_out=0.8, max_tile_n=1024):
    """x: [N, D] points on the hyperboloid (time coord at column 0). Returns [N, D]."""
    n, d = x.shape
    tile_n = _pick_tile_n(n, d, max_tile_n)
    n_pad = _round_up(n, tile_n)

    # Present the data lane-dense: [D, N] with points on the lane axis.  If the
    # surrounding model can keep activations in this "feature-major" layout, the
    # two transposes below disappear entirely.
    xt = x.T
    if n_pad != n:
        xt = jnp.pad(xt, ((0, 0), (0, n_pad - n)))   # zero columns are NaN-safe

    kernel = functools.partial(_lorentz_act_kernel, c_in=float(c_in), c_out=float(c_out))
    out_t = pl.pallas_call(
        kernel,
        out_shape=jax.ShapeDtypeStruct((d, n_pad), x.dtype),
        grid_spec=pltpu.PrefetchScalarGridSpec(
            num_scalar_prefetch=0,
            grid=(n_pad // tile_n,),
            in_specs=[pl.BlockSpec((d, tile_n), lambda i: (0, i))],
            out_specs=pl.BlockSpec((d, tile_n), lambda i: (0, i)),
        ),
        compiler_params=pltpu.CompilerParams(dimension_semantics=("parallel",)),
    )(xt)

    if n_pad != n:
        out_t = out_t[:, :n]
    return out_t.T


# ---------------- pure-JAX reference for verification ----------------
def _reference(x, c_in, c_out):
    x = x.astype(jnp.float32)
    x0 = x[:, :1]
    xt = x[:, 1:]
    sqrt_cin = c_in ** 0.5
    z = jnp.maximum(x0 / sqrt_cin + _EPS, 1.0 + _EPS)
    dist = sqrt_cin * jnp.log(z + jnp.sqrt(z * z - 1.0))
    tmp_norm = jnp.sqrt(jnp.sum(xt * xt, axis=-1, keepdims=True) + _EPS)
    u_tail = jnp.maximum((dist / tmp_norm) * xt, 0.0)
    sqrt_cout = c_out ** 0.5
    u_lnorm = jnp.sqrt(jnp.maximum(jnp.sum(u_tail * u_tail, -1, keepdims=True) + _EPS, 1e-6))
    theta = jnp.minimum(u_lnorm, 50.0) / sqrt_cout
    res_tail = sqrt_cout * jnp.sinh(theta) * u_tail / u_lnorm
    tn = jnp.sqrt(jnp.sum(res_tail * res_tail, -1, keepdims=True))
    res_tail = res_tail * jnp.where(tn > _MAX_NORM, _MAX_NORM / (tn + 1e-7), 1.0)
    time = jnp.sqrt(c_out + jnp.sum(res_tail * res_tail, -1, keepdims=True))
    return jnp.concatenate([time, res_tail], axis=-1)


def _make_points(key, n, d, c):
    tail = jax.random.normal(key, (n, d - 1), dtype=jnp.float32)
    time = jnp.sqrt(c + jnp.sum(tail * tail, axis=-1, keepdims=True))
    return jnp.concatenate([time, tail], axis=-1)      # <x,x>_L = -c


if __name__ == "__main__":
    c_in, c_out = 1.0, 0.8
    key = jax.random.PRNGKey(0)
    k1, k2 = jax.random.split(key)

    # Case 1: small, tile-aligned-ish shape (64 points, D=32 ambient Lorentz dim).
    x1 = _make_points(k1, 64, 32, c_in)
    out1 = jax.block_until_ready(lorentz_act(x1, c_in=c_in, c_out=c_out))
    ref1 = _reference(x1, c_in, c_out)
    assert out1.shape == x1.shape
    assert jnp.allclose(out1, ref1, atol=1e-5, rtol=1e-5), "mismatch vs reference (case 1)"

    # Case 2: ragged N + multi-step grid (exercises padding and >=2 parallel steps).
    x2 = _make_points(k2, 200, 32, c_in)
    out2 = jax.block_until_ready(lorentz_act(x2, c_in=c_in, c_out=c_out, max_tile_n=128))
    ref2 = _reference(x2, c_in, c_out)
    assert out2.shape == x2.shape
    assert jnp.allclose(out2, ref2, atol=1e-5, rtol=1e-5), "mismatch vs reference (case 2)"

    print("KERNEL_OK")
</pallas_src>

<mosaic_0001>
module attributes {stable_mosaic.version = 11 : i64} {
  func.func @_lorentz_act_kernel(%arg0: i32, %arg1: memref<32x128xf32, #tpu.memory_space<vmem>>, %arg2: memref<32x128xf32, #tpu.memory_space<vmem>>) attributes {dimension_semantics = [#tpu.dimension_semantics<parallel>], iteration_bounds = array<i64: 1>, scalar_prefetch = 0 : i64, scratch_operands = 0 : i64, tpu.core_type = #tpu.core_type<tc>, window_params = [{transform_indices = @transform_0, window_bounds = array<i64: 32, 128>}, {transform_indices = @transform_1, window_bounds = array<i64: 32, 128>}]} {
    %c0 = arith.constant 0 : index
    %c0_0 = arith.constant 0 : index
    %0 = vector.load %arg1[%c0, %c0_0] : memref<32x128xf32, #tpu.memory_space<vmem>>, vector<32x128xf32>
    %1 = tpu.iota {dimensions = array<i32: 0>} : vector<32x128xi32>
    %c0_i32 = arith.constant 0 : i32
    %2 = vector.broadcast %c0_i32 : i32 to vector<32x128xi32>
    %3 = arith.cmpi eq, %1, %2 : vector<32x128xi32>
    %4 = vector.extract_strided_slice %0 {offsets = [0, 0], sizes = [1, 128], strides = [1, 1]} : vector<32x128xf32> to vector<1x128xf32>
    %cst = arith.constant 0.000000e+00 : f32
    %5 = vector.broadcast %cst : f32 to vector<32x128xf32>
    %6 = arith.select %3, %5, %0 : vector<32x128xi1>, vector<32x128xf32>
    %cst_1 = arith.constant 1.000000e+00 : f32
    %7 = vector.broadcast %cst_1 : f32 to vector<1x128xf32>
    %8 = arith.mulf %4, %7 : vector<1x128xf32>
    %cst_2 = arith.constant 1.000000e-07 : f32
    %9 = vector.broadcast %cst_2 : f32 to vector<1x128xf32>
    %10 = arith.addf %8, %9 : vector<1x128xf32>
    %cst_3 = arith.constant 1.00000012 : f32
    %11 = vector.broadcast %cst_3 : f32 to vector<1x128xf32>
    %12 = arith.maximumf %10, %11 : vector<1x128xf32>
    %13 = arith.mulf %12, %12 : vector<1x128xf32>
    %cst_4 = arith.constant 1.000000e+00 : f32
    %14 = vector.broadcast %cst_4 : f32 to vector<1x128xf32>
    %15 = arith.subf %13, %14 : vector<1x128xf32>
    %16 = math.sqrt %15 : vector<1x128xf32>
    %17 = arith.addf %12, %16 : vector<1x128xf32>
    %18 = math.log %17 : vector<1x128xf32>
    %cst_5 = arith.constant 1.000000e+00 : f32
    %19 = vector.broadcast %cst_5 : f32 to vector<1x128xf32>
    %20 = arith.mulf %19, %18 : vector<1x128xf32>
    %21 = arith.mulf %6, %6 : vector<32x128xf32>
    %cst_6 = arith.constant dense<0.000000e+00> : vector<128xf32>
    %22 = vector.multi_reduction <add>, %21, %cst_6 [0] : vector<32x128xf32> to vector<128xf32>
    %23 = vector.shape_cast %22 : vector<128xf32> to vector<1x128xf32>
    %cst_7 = arith.constant 1.000000e-07 : f32
    %24 = vector.broadcast %cst_7 : f32 to vector<1x128xf32>
    %25 = arith.addf %23, %24 : vector<1x128xf32>
    %26 = math.rsqrt %25 : vector<1x128xf32>
    %27 = arith.mulf %20, %26 : vector<1x128xf32>
    %28 = vector.broadcast %27 : vector<1x128xf32> to vector<32x128xf32>
    %29 = arith.mulf %28, %6 : vector<32x128xf32>
    %cst_8 = arith.constant 0.000000e+00 : f32
    %30 = vector.broadcast %cst_8 : f32 to vector<32x128xf32>
    %31 = arith.maximumf %29, %30 : vector<32x128xf32>
    %32 = arith.mulf %31, %31 : vector<32x128xf32>
    %cst_9 = arith.constant dense<0.000000e+00> : vector<128xf32>
    %33 = vector.multi_reduction <add>, %32, %cst_9 [0] : vector<32x128xf32> to vector<128xf32>
    %34 = vector.shape_cast %33 : vector<128xf32> to vector<1x128xf32>
    %cst_10 = arith.constant 1.000000e-07 : f32
    %35 = vector.broadcast %cst_10 : f32 to vector<1x128xf32>
    %36 = arith.addf %34, %35 : vector<1x128xf32>
    %cst_11 = arith.constant 9.99999997E-7 : f32
    %37 = vector.broadcast %cst_11 : f32 to vector<1x128xf32>
    %38 = arith.maximumf %36, %37 : vector<1x128xf32>
    %39 = math.rsqrt %38 : vector<1x128xf32>
    %40 = arith.mulf %38, %39 : vector<1x128xf32>
    %cst_12 = arith.constant 5.000000e+01 : f32
    %41 = vector.broadcast %cst_12 : f32 to vector<1x128xf32>
    %42 = arith.minimumf %40, %41 : vector<1x128xf32>
    %cst_13 = arith.constant 1.11803401 : f32
    %43 = vector.broadcast %cst_13 : f32 to vector<1x128xf32>
    %44 = arith.mulf %42, %43 : vector<1x128xf32>
    %45 = math.exp %44 : vector<1x128xf32>
    %46 = tpu.reciprocal %45 : vector<1x128xf32> -> vector<1x128xf32>
    %47 = arith.subf %45, %46 : vector<1x128xf32>
    %cst_14 = arith.constant 5.000000e-01 : f32
    %48 = vector.broadcast %cst_14 : f32 to vector<1x128xf32>
    %49 = arith.mulf %48, %47 : vector<1x128xf32>
    %cst_15 = arith.constant 0.89442718 : f32
    %50 = vector.broadcast %cst_15 : f32 to vector<1x128xf32>
    %51 = arith.mulf %50, %49 : vector<1x128xf32>
    %52 = arith.mulf %51, %39 : vector<1x128xf32>
    %53 = arith.mulf %52, %40 : vector<1x128xf32>
    %cst_16 = arith.constant 1.000000e+03 : f32
    %54 = vector.broadcast %cst_16 : f32 to vector<1x128xf32>
    %55 = arith.cmpf ogt, %53, %54 : vector<1x128xf32>
    %cst_17 = arith.constant 1.000000e-07 : f32
    %56 = vector.broadcast %cst_17 : f32 to vector<1x128xf32>
    %57 = arith.addf %53, %56 : vector<1x128xf32>
    %cst_18 = arith.constant 1.000000e+03 : f32
    %58 = vector.broadcast %cst_18 : f32 to vector<1x128xf32>
    %59 = arith.divf %58, %57 : vector<1x128xf32>
    %cst_19 = arith.constant 1.000000e+00 : f32
    %60 = vector.broadcast %cst_19 : f32 to vector<1x128xf32>
    %61 = arith.select %55, %59, %60 : vector<1x128xi1>, vector<1x128xf32>
    %62 = arith.mulf %52, %61 : vector<1x128xf32>
    %63 = vector.broadcast %62 : vector<1x128xf32> to vector<32x128xf32>
    %64 = arith.mulf %63, %31 : vector<32x128xf32>
    %65 = arith.mulf %62, %62 : vector<1x128xf32>
    %66 = arith.mulf %65, %34 : vector<1x128xf32>
    %cst_20 = arith.constant 8.000000e-01 : f32
    %67 = vector.broadcast %cst_20 : f32 to vector<1x128xf32>
    %68 = arith.addf %67, %66 : vector<1x128xf32>
    %69 = math.sqrt %68 : vector<1x128xf32>
    %70 = vector.shape_cast %69 : vector<1x128xf32> to vector<1x128xf32>
    %71 = vector.broadcast %70 : vector<1x128xf32> to vector<32x128xf32>
    %72 = arith.select %3, %71, %64 : vector<32x128xi1>, vector<32x128xf32>
    %c0_21 = arith.constant 0 : index
    %c0_22 = arith.constant 0 : index
    %73 = vector.load %arg2[%c0_21, %c0_22] : memref<32x128xf32, #tpu.memory_space<vmem>>, vector<32x128xf32>
    tpu.vector_store %arg2[%c0_21, %c0_22], %72 {strides = array<i32>} : memref<32x128xf32, #tpu.memory_space<vmem>>, vector<32x128xf32>,
    return
  }
  func.func @transform_0(%arg0: i32) -> (i32, i32) {
    %c0_i32 = arith.constant 0 : i32
    %c0_i32_0 = arith.constant 0 : i32
    return %c0_i32, %arg0 : i32, i32
  }
  func.func @transform_1(%arg0: i32) -> (i32, i32) {
    %c0_i32 = arith.constant 0 : i32
    %c0_i32_0 = arith.constant 0 : i32
    return %c0_i32, %arg0 : i32, i32
  }
}

</mosaic_0001>

<llo_original>
// kernel: tpu_custom_call.1
$region0: #{tpu_custom_call.1}
  #allocation0 [shape = 'u32[]', space=smem, size = 0x4, offset = 0x4, fixed_abs, tag = 'smem constant byte address 0x4 - core index']
  #allocation1 [shape = 'u32[144,128]{1,0:T(1,128)}', space=vmem, size = 0x12000, scoped, tag = 'internal scratch']
  %s0 = inlined_call_operand.hbm [shape: f32[32,128], index: 0, kind: input, shape index: {}]
  %s1 = inlined_call_operand.hbm [shape: f32[32,128], index: 1, kind: output, shape index: {}]
  %s2 = sld [smem:[#allocation0]]
  $region18: #{tpu_custom_call.1} parent=0
    _
  %s4 = ssub.s32 1, %s2
  %s5 = scalar_select 0, %s4, %s2
  $region1: #{tpu_custom_call.1} parent=0
    #allocation2 [shape = 'u8[16384]{0}', space=vmem, size = 0x4000, scoped, tag = 'input window, operand 0, single buffered']
    #allocation3 [shape = 's32[1]{0}', space=sflag, size = 0x4, scoped, tag = 'scoped memory for tpu_custom_call.1']
    #allocation4 [shape = 's32[1]{0}', space=sflag, size = 0x4, scoped, tag = 'scoped memory for tpu_custom_call.1']
    #allocation5 [shape = 'u8[16384]{0}', space=vmem, size = 0x4000, scoped, tag = 'output window, operand 0, single buffered']
    %6 = vsyncpa [#allocation3], 0
    %7 = vsyncpa [#allocation4], 0
    // Predicated region
    $region2: #{tpu_custom_call.1} parent=1 // pred_check
      _
    $region3: #{tpu_custom_call.1} parent=1 // pred_check_branch
      %9 = sbr.rel (0) target = $region5
    $region4: #{tpu_custom_call.1} parent=1 // pred_region
      %s11 = ssub.s32 512, 512
      %12 = vsyncadd [#allocation3], %s11
      %s13 = sshll.u32 [#allocation2], 4
      %s14 = int_to_ptr.vmem [resolvable:$true] %s13
      %19 = dma.hbm_to_vmem [thread:$0]  %s0, 512, %s14, [#allocation3], 128, 128, 8
    $region5: #{tpu_custom_call.1} parent=1 // pred_fallthru
      _
    // Predicated region
    $region6: #{tpu_custom_call.1} parent=1 // pred_check
      _
    $region7: #{tpu_custom_call.1} parent=1 // pred_check_branch
      %21 = sbr.rel (0) target = $region9
    $region8: #{tpu_custom_call.1} parent=1 // pred_region
      %22 = dma.done [#allocation3], 512
    $region9: #{tpu_custom_call.1} parent=1 // pred_fallthru
      _
    %v23 = vld [vmem:[#allocation2] sm:$0xff]
    %v24 = vld [vmem:[#allocation2 + $0x8] sm:$0xff]
    %v25 = vld [vmem:[#allocation2 + $0x10] sm:$0xff]
    %v26 = vld [vmem:[#allocation2 + $0x18] sm:$0xff]
    %v27 = vlaneseq
    %v28 = vshrl.u32 %v27, 7
    %v29 = vadd.s32 %v28, 8
    %v30 = vadd.s32 %v28, 16
    %v31 = vadd.s32 %v28, 24
    %vm32 = vcmp.eq.s32.totalorder %v28, 0
    %vm33 = vcmp.eq.s32.totalorder %v29, 0
    %vm34 = vcmp.eq.s32.totalorder %v30, 0
    %vm35 = vcmp.eq.s32.totalorder %v31, 0
    %v36 = vsel %vm32, 0.0, %v23
    %v37 = vsel %vm33, 0.0, %v24
    %v38 = vsel %vm34, 0.0, %v25
    %v39 = vsel %vm35, 0.0, %v26
    %v40 = vadd.f32 %v23, 1e-07
    %v41 = vmax.f32 %v40, 1.0000001
    %v42 = vmul.f32 %v41, %v41
    %v43 = vsub.f32 %v42, 1.0
    %v44 = vrsqrt.pop %v43
    %v45 = vmul.f32 %v43, %v44
    %vm46 = vcmp.eq.f32.partialorder %v43, inf
    %v47 = vsel %vm46, %v43, %v45
    %vm48 = vcmp.eq.f32.partialorder %v43, 0.0
    %v49 = vand.u32 %v43, 2147483648
    %v50 = vsel %vm48, %v49, %v47
    %v51 = vadd.f32 %v41, %v50
    %v52 = vlog2.pop %v51
    %v53 = vmul.f32 %v52, 0.6931472
    %v54 = vmul.f32 %v36, %v36
    %v55 = vmul.f32 %v37, %v37
    %v56 = vmul.f32 %v38, %v38
    %v57 = vmul.f32 %v39, %v39
    %v58 = vadd.f32 %v54, %v55
    %v59 = vadd.f32 %v58, %v56
    %v60 = vadd.f32 %v59, %v57
    %v61 = vrot.slane %v60, 4
    %v62 = vadd.f32 %v60, %v61
    %v63 = vrot.slane %v62, 2
    %v64 = vadd.f32 %v62, %v63
    %v65 = vrot.slane %v64, 1
    %v66 = vadd.f32 %v64, %v65
    %v67 = vadd.f32 %v66, 1e-07
    %v68 = vrsqrt.pop %v67
    %v69 = vmul.f32 %v53, %v68
    %v70 = vlaneseq
    %v71 = vshrl.u32 %v70, 7
    %v72 = vsub.s32 0, %v71
    %v73 = vrot.slane %v69, %v72
    %v74 = vmul.f32 %v73, %v36
    %v75 = vmul.f32 %v73, %v37
    %v76 = vmul.f32 %v73, %v38
    %v77 = vmul.f32 %v73, %v39
    %v78 = vmax.f32 %v74, 0.0
    %v79 = vmax.f32 %v75, 0.0
    %v80 = vmax.f32 %v76, 0.0
    %v81 = vmax.f32 %v77, 0.0
    %v82 = vmul.f32 %v78, %v78
    %v83 = vmul.f32 %v79, %v79
    %v84 = vmul.f32 %v80, %v80
    %v85 = vmul.f32 %v81, %v81
    %v86 = vadd.f32 %v82, %v83
    %v87 = vadd.f32 %v86, %v84
    %v88 = vadd.f32 %v87, %v85
    %v89 = vrot.slane %v88, 4
    %v90 = vadd.f32 %v88, %v89
    %v91 = vrot.slane %v90, 2
    %v92 = vadd.f32 %v90, %v91
    %v93 = vrot.slane %v92, 1
    %v94 = vadd.f32 %v92, %v93
    %v95 = vadd.f32 %v94, 1e-07
    %v96 = vmax.f32 %v95, 1e-06
    %v97 = vrsqrt.pop %v96
    %v98 = vmul.f32 %v96, %v97
    %v99 = vmin.f32 %v98, 50.0
    %v100 = vmul.f32 %v99, 1.118034
    %v101 = vmul.f32 %v100, 1.442695
    %v102 = vpow.pop %v101
    %v103 = vrcp.pop %v102
    %v104 = vsub.f32 %v102, %v103
    %v105 = vmul.f32 %v104, 0.5
    %v106 = vmul.f32 %v105, 0.8944272
    %v107 = vmul.f32 %v106, %v97
    %v108 = vmul.f32 %v107, %v98
    %vm109 = vcmp.gt.f32.partialorder %v108, 1000.0
    %v110 = vadd.f32 %v108, 1e-07
    %v111 = vrcp.pop %v110
    %v112 = vmul.f32 1000.0, %v111
    %v113 = vsel %vm109, %v112, 1.0
    %v114 = vmul.f32 %v107, %v113
    %v115 = vmul.f32 %v114, %v78
    %v116 = vmul.f32 %v114, %v79
    %v117 = vmul.f32 %v114, %v80
    %v118 = vmul.f32 %v114, %v81
    %v119 = vmul.f32 %v114, %v114
    %v120 = vmul.f32 %v119, %v94
    %v121 = vadd.f32 %v120, 0.8
    %v122 = vrsqrt.pop %v121
    %v123 = vmul.f32 %v121, %v122
    %vm124 = vcmp.eq.f32.partialorder %v121, inf
    %v125 = vsel %vm124, %v121, %v123
    %vm126 = vcmp.eq.f32.partialorder %v121, 0.0
    %v127 = vand.u32 %v121, 2147483648
    %v128 = vsel %vm126, %v127, %v125
    %v129 = vsel %vm32, %v128, %v115
    %v130 = vsel %vm33, %v128, %v116
    %v131 = vsel %vm34, %v128, %v117
    %v132 = vsel %vm35, %v128, %v118
    %133 = vst [vmem:[#allocation5] sm:$0xff] %v129
    %134 = vst [vmem:[#allocation5 + $0x8] sm:$0xff] %v130
    %135 = vst [vmem:[#allocation5 + $0x10] sm:$0xff] %v131
    %136 = vst [vmem:[#allocation5 + $0x18] sm:$0xff] %v132
    // Predicated region
    $region10: #{tpu_custom_call.1} parent=1 // pred_check
      _
    $region11: #{tpu_custom_call.1} parent=1 // pred_check_branch
      %138 = sbr.rel (0) target = $region13
    $region12: #{tpu_custom_call.1} parent=1 // pred_region
      %s140 = ssub.s32 512, 512
      %141 = vsyncadd [#allocation4], %s140
      %s142 = sshll.u32 [#allocation5], 4
      %s143 = int_to_ptr.vmem [resolvable:$true] %s142
      %148 = dma.vmem_to_hbm [thread:$0]  %s143, 512, %s1, [#allocation4], 128, 128, 8
    $region13: #{tpu_custom_call.1} parent=1 // pred_fallthru
      _
    // Predicated region
    $region14: #{tpu_custom_call.1} parent=1 // pred_check
      _
    $region15: #{tpu_custom_call.1} parent=1 // pred_check_branch
      %150 = sbr.rel (0) target = $region17
    $region16: #{tpu_custom_call.1} parent=1 // pred_region
      %151 = dma.done [#allocation4], 512
    $region17: #{tpu_custom_call.1} parent=1 // pred_fallthru
      _
    %152 = vsyncpa [#allocation3], 1
    %153 = vsyncpa [#allocation4], 1

</llo_original>
